<compile_context>
chip_gen: v6e
topology: v6e:2x2x1
jax: 0.10.0
libtpu: 0.0.40
codegen_flags: <defaults>
</compile_context>

<pallas_src>
import functools

import jax
import jax.numpy as jnp
from jax.experimental import pallas as pl
from jax.experimental.pallas import tpu as pltpu

_LANES = 128
_TARGET_BLOCK_BYTES = 8 * 1024 * 1024   # per-block VMEM tile (~8 MiB)
_VMEM_LIMIT_BYTES = 48 * 1024 * 1024    # > scoped defaults, < v7x 64 MiB phys


def _round_up(x: int, m: int) -> int:
    return -(-x // m) * m


def _row_align_for(itemsize: int) -> int:
    # dtype-aware sublane packing: f32 -> 8, bf16/f16 -> 16, int8/fp8 -> 32
    return {4: 8, 2: 16, 1: 32}.get(itemsize, 8)


def _choose_block_rows(rows: int, row_align: int, itemsize: int) -> int:
    """Pick block height: ~8 MiB blocks, sublane-aligned, and an even number
    of near-equal blocks so a v7x megacore can balance both TensorCores."""
    target_rows = max(row_align, _TARGET_BLOCK_BYTES // (_LANES * itemsize))
    if rows <= 2 * row_align:
        return rows  # single tiny block; block == full array dim is legal
    if rows <= target_rows:
        # Fits in one target block: split into two aligned near-halves so the
        # two v7x TensorCores each get one block (no-op perf-wise on v5e/v6e).
        return _round_up(pl.cdiv(rows, 2), row_align)
    # Large array: even number of near-equal aligned blocks.
    nblk = pl.cdiv(rows, target_rows)
    nblk += nblk % 2
    return _round_up(pl.cdiv(rows, nblk), row_align)


def _make_scale_kernel(scale: float):
    scale_f = float(scale)  # Python scalar -> kernel immediate (weak-typed),
                            # keeps x's dtype, no captured array constant.

    def _scale_kernel(x_ref, o_ref):
        o_ref[...] = x_ref[...] * scale_f

    return _scale_kernel


@functools.partial(jax.jit, static_argnames=("scale",))
def _scale_forward_pallas(x: jax.Array, scale: float) -> jax.Array:
    orig_shape = x.shape
    dtype = x.dtype
    itemsize = jnp.dtype(dtype).itemsize
    n = x.size

    # Flatten to a lane-dense (rows, 128) slab. Under jit the reshape of a
    # contiguous buffer is metadata-only; ragged sizes get one fused pad.
    rows = pl.cdiv(n, _LANES)
    n_pad = rows * _LANES
    x_flat = jnp.ravel(x)
    if n_pad != n:
        x_flat = jnp.pad(x_flat, (0, n_pad - n))
    x2d = x_flat.reshape(rows, _LANES)

    row_align = _row_align_for(itemsize)
    block_rows = _choose_block_rows(rows, row_align, itemsize)
    grid = (pl.cdiv(rows, block_rows),)  # ragged last block masked by Pallas

    # TODO(synk): add input_output_aliases={0: 0} once callers donate x
    # (in-place scaling halves HBM footprint; needs donation to avoid a copy).
    out2d = pl.pallas_call(
        _make_scale_kernel(scale),
        out_shape=jax.ShapeDtypeStruct((rows, _LANES), dtype),
        grid=grid,
        in_specs=[pl.BlockSpec((block_rows, _LANES), lambda i: (i, 0))],
        out_specs=pl.BlockSpec((block_rows, _LANES), lambda i: (i, 0)),
        compiler_params=pltpu.CompilerParams(
            dimension_semantics=("parallel",),
            vmem_limit_bytes=_VMEM_LIMIT_BYTES,
        ),
        cost_estimate=pl.CostEstimate(
            flops=n_pad,
            transcendentals=0,
            bytes_accessed=2 * n_pad * itemsize,
        ),
    )(x2d)

    out_flat = out2d.reshape(-1)
    if n_pad != n:
        out_flat = out_flat[:n]
    return out_flat.reshape(orig_shape)


@functools.partial(jax.jit, static_argnames=("scale",))
def _scale_xla(x: jax.Array, scale: float) -> jax.Array:
    return x * scale


def scale_forward(x: jax.Array, scale: float, *,
                  small_fallback_bytes: int = 0) -> jax.Array:
    """x * scale (Scale.forward). Pallas kernel for floating dtypes.

    `small_fallback_bytes`: if x is smaller than this, use plain XLA so the
    scale can fuse into neighboring ops (recommended ~512 KiB in a real
    model). Default 0 so this demo always exercises the Pallas path.
    """
    if x.size == 0:
        return x
    nbytes = x.size * jnp.dtype(x.dtype).itemsize
    if nbytes < small_fallback_bytes or not jnp.issubdtype(x.dtype, jnp.floating):
        # Integer inputs: plain JAX multiply (promotes like torch int*float).
        return _scale_xla(x, float(scale))
    return _scale_forward_pallas(x, float(scale))


if __name__ == "__main__":
    key = jax.random.PRNGKey(0)
    scale = 0.5  # deterministic "parameter" from Scale(scale=0.5)

    # Small NCHW-ish input consistent with a conv-style pipeline.
    x = jax.random.normal(key, (2, 4, 16, 16), dtype=jnp.float32)
    y = scale_forward(x, scale)
    jax.block_until_ready(y)
    y_ref = x * scale
    assert y.shape == x.shape and y.dtype == x.dtype
    assert jnp.allclose(y, y_ref, atol=1e-6), "mismatch vs reference (main)"

    # Ragged-size case (n % 128 != 0) exercises the fused pad+slice path.
    x2 = jax.random.normal(jax.random.PRNGKey(1), (7, 33), dtype=jnp.float32)
    y2 = scale_forward(x2, scale)
    jax.block_until_ready(y2)
    assert y2.shape == x2.shape and y2.dtype == x2.dtype
    assert jnp.allclose(y2, x2 * scale, atol=1e-6), "mismatch vs reference (ragged)"

    print("KERNEL_OK")
</pallas_src>

<mosaic_0001>
module attributes {stable_mosaic.version = 11 : i64} {
  func.func @_scale_kernel(%arg0: i32, %arg1: memref<16x128xf32, #tpu.memory_space<vmem>>, %arg2: memref<16x128xf32, #tpu.memory_space<vmem>>) attributes {dimension_semantics = [#tpu.dimension_semantics<parallel>], iteration_bounds = array<i64: 1>, scalar_prefetch = 0 : i64, scratch_operands = 0 : i64, tpu.core_type = #tpu.core_type<tc>, window_params = [{transform_indices = @transform_0, window_bounds = array<i64: 16, 128>}, {transform_indices = @transform_1, window_bounds = array<i64: 16, 128>}]} {
    %c0 = arith.constant 0 : index
    %c0_0 = arith.constant 0 : index
    %0 = vector.load %arg1[%c0, %c0_0] : memref<16x128xf32, #tpu.memory_space<vmem>>, vector<16x128xf32>
    %cst = arith.constant 5.000000e-01 : f32
    %1 = vector.broadcast %cst : f32 to vector<16x128xf32>
    %2 = arith.mulf %0, %1 : vector<16x128xf32>
    %c0_1 = arith.constant 0 : index
    %c0_2 = arith.constant 0 : index
    %3 = vector.load %arg2[%c0_1, %c0_2] : memref<16x128xf32, #tpu.memory_space<vmem>>, vector<16x128xf32>
    tpu.vector_store %arg2[%c0_1, %c0_2], %2 {strides = array<i32>} : memref<16x128xf32, #tpu.memory_space<vmem>>, vector<16x128xf32>,
    return
  }
  func.func @transform_0(%arg0: i32) -> (i32, i32) {
    %c0_i32 = arith.constant 0 : i32
    %c0_i32_0 = arith.constant 0 : i32
    return %arg0, %c0_i32 : i32, i32
  }
  func.func @transform_1(%arg0: i32) -> (i32, i32) {
    %c0_i32 = arith.constant 0 : i32
    %c0_i32_0 = arith.constant 0 : i32
    return %arg0, %c0_i32 : i32, i32
  }
}

</mosaic_0001>

<llo_original>
// kernel: _scale_forward_pallas.1
$region0: #{_scale_forward_pallas.1}
  #allocation0 [shape = 'u32[]', space=smem, size = 0x4, offset = 0x4, fixed_abs, tag = 'smem constant byte address 0x4 - core index']
  #allocation1 [shape = 'u32[144,128]{1,0:T(1,128)}', space=vmem, size = 0x12000, scoped, tag = 'internal scratch']
  %s0 = inlined_call_operand.vmem [shape: f32[16,128], index: 0, kind: input, shape index: {}]
  %s1 = inlined_call_operand.vmem [shape: f32[16,128], index: 1, kind: output, shape index: {}]
  %s2 = sld [smem:[#allocation0]]
  $region14: #{_scale_forward_pallas.1} parent=0
    _
  %s4 = ssub.s32 1, %s2
  %s5 = scalar_select 0, %s4, %s2
  // Predicated region
  $region2: #{_scale_forward_pallas.1} parent=0 // pred_check
    _
  $region3: #{_scale_forward_pallas.1} parent=0 // pred_check_branch
    %7 = sbr.rel (0) target = $region5
  $region4: #{_scale_forward_pallas.1} parent=0 // pred_region
    _
  $region5: #{_scale_forward_pallas.1} parent=0 // pred_fallthru
    _
  %v8 = vld [vmem:[%s0] sm:$0xff]
  %v9 = vld [vmem:[%s0 + $0x8] sm:$0xff]
  %v10 = vmul.f32 %v8, 0.5
  %v11 = vmul.f32 %v9, 0.5
  %12 = vst [vmem:[%s1] sm:$0xff] %v10
  %13 = vst [vmem:[%s1 + $0x8] sm:$0xff] %v11
  // Predicated region
  $region6: #{_scale_forward_pallas.1} parent=0 // pred_check
    _
  $region7: #{_scale_forward_pallas.1} parent=0 // pred_check_branch
    %15 = sbr.rel (0) target = $region9
  $region8: #{_scale_forward_pallas.1} parent=0 // pred_region
    _
  $region9: #{_scale_forward_pallas.1} parent=0 // pred_fallthru
    _
  // Predicated region
  $region10: #{_scale_forward_pallas.1} parent=0 // pred_check
    _
  $region11: #{_scale_forward_pallas.1} parent=0 // pred_check_branch
    %17 = sbr.rel (0) target = $region13
  $region12: #{_scale_forward_pallas.1} parent=0 // pred_region
    _
  $region13: #{_scale_forward_pallas.1} parent=0 // pred_fallthru
    _

</llo_original>
